<compile_context>
chip_gen: v6e
topology: v6e:2x2x1
jax: 0.10.0
libtpu: 0.0.40
codegen_flags: <defaults>
</compile_context>

<pallas_src>
import functools

import jax
import jax.numpy as jnp
from jax.experimental import pallas as pl
from jax.experimental.pallas import tpu as pltpu

HIDDEN = 128


def _round_up(x, m):
    return ((x + m - 1) // m) * m


def dqn_kernel(x_ref, w1_ref, b1_ref, w2_ref, b2_ref, out_ref):
    # x_ref: (TILE_B, d_in) f32 -> cast to bf16 on the VPU (free slot next to MXU).
    x = x_ref[...].astype(jnp.bfloat16)
    h = jnp.dot(x, w1_ref[...], preferred_element_type=jnp.float32)   # MXU, f32 acc
    h = jnp.maximum(h + b1_ref[...], 0.0)                             # VPU, f32
    y = jnp.dot(h.astype(jnp.bfloat16), w2_ref[...],
                preferred_element_type=jnp.float32)                   # MXU, f32 acc
    out_ref[...] = (y + b2_ref[...]).astype(out_ref.dtype)            # bf16 store


def _choose_tile_b(B, d_in, d_out_p, tile_b):
    # Multiples of 16 (bf16 output packs 16 rows per sublane tile).
    tile_b = max(16, min(_round_up(tile_b, 16), _round_up(B, 16)))
    if B >= 32 and pl.cdiv(B, tile_b) < 2:
        # Ensure >= 2 grid steps so the "parallel" batch axis uses both v7x cores.
        tile_b = _round_up(pl.cdiv(B, 2), 16)
    if tile_b > B:
        # Tiny-batch path: keep the single block within the array bounds.
        tile_b = (B // 8) * 8 if B >= 8 else B
    # Fit double-buffered x (f32) + out (bf16) blocks in ~24 MiB of VMEM
    # (leaves headroom under v7x's 64 MiB physical VMEM).
    budget = 24 << 20
    while tile_b > 16 and (2 * tile_b * d_in * 4 + 2 * tile_b * d_out_p * 2) > budget:
        tile_b = _round_up(tile_b // 2, 16)
    return tile_b


def dqn_forward(x, w1, b1, w2, b2, tile_b=2048):
    """y = relu(x @ w1 + b1) @ w2 + b2  (PyTorch nn.Linear with W pre-transposed)."""
    B, d_in = x.shape
    d_out = w2.shape[1]
    d_out_p = _round_up(d_out, 128)              # keep output stores lane-dense
    tile_b = _choose_tile_b(B, d_in, d_out_p, tile_b)
    n_tiles = pl.cdiv(B, tile_b)                 # no batch padding; last block partial

    # Weights are tiny and VMEM-resident: one-time host pad/cast is negligible.
    w1_b = w1.astype(jnp.bfloat16)
    w2_b = jnp.pad(w2, ((0, 0), (0, d_out_p - d_out))).astype(jnp.bfloat16)
    b1_2d = b1.reshape(1, HIDDEN).astype(jnp.float32)
    b2_2d = jnp.pad(b2, (0, d_out_p - d_out)).reshape(1, d_out_p).astype(jnp.float32)

    weight_bytes = w1_b.size * 2 + b1_2d.size * 4 + w2_b.size * 2 + b2_2d.size * 4
    block_bytes = 2 * tile_b * d_in * 4 + 2 * tile_b * d_out_p * 2
    vmem_limit = int(min(max(block_bytes + 2 * weight_bytes + (8 << 20), 32 << 20),
                         48 << 20))

    flops = 2 * B * HIDDEN * (d_in + d_out_p)
    bytes_accessed = x.size * 4 + weight_bytes + B * d_out_p * 2

    def build(single_buffer_weights):
        if single_buffer_weights:
            # Constant index_map already avoids re-DMA; Buffered(1) additionally
            # drops the second (unused) VMEM buffer for the resident operands.
            resident = functools.partial(pl.BlockSpec, pipeline_mode=pl.Buffered(1))
        else:
            resident = pl.BlockSpec
        return pl.pallas_call(
            dqn_kernel,
            out_shape=jax.ShapeDtypeStruct((B, d_out_p), jnp.bfloat16),
            grid_spec=pl.GridSpec(
                grid=(n_tiles,),
                in_specs=[
                    pl.BlockSpec((tile_b, d_in), lambda i: (i, 0)),    # streamed f32
                    resident((d_in, HIDDEN), lambda i: (0, 0)),        # resident
                    resident((1, HIDDEN), lambda i: (0, 0)),           # resident
                    resident((HIDDEN, d_out_p), lambda i: (0, 0)),     # resident
                    resident((1, d_out_p), lambda i: (0, 0)),          # resident
                ],
                out_specs=pl.BlockSpec((tile_b, d_out_p), lambda i: (i, 0)),
            ),
            compiler_params=pltpu.CompilerParams(
                dimension_semantics=("parallel",),
                vmem_limit_bytes=vmem_limit),
            cost_estimate=pl.CostEstimate(
                flops=flops, transcendentals=0, bytes_accessed=bytes_accessed),
        )

    try:
        out_padded = build(True)(x, w1_b, b1_2d, w2_b, b2_2d)
    except Exception:
        # Fallback if this JAX build rejects pipeline_mode=pl.Buffered(1);
        # identical kernel, just default double-buffered resident weights.
        out_padded = build(False)(x, w1_b, b1_2d, w2_b, b2_2d)

    return out_padded[:, :d_out]


def init_params(key, input_dim, output_dim):
    # Deterministic synthetic init mimicking PyTorch's U(-1/sqrt(fan_in), 1/sqrt(fan_in)).
    k1, k2, k3, k4 = jax.random.split(key, 4)
    bound1 = 1.0 / jnp.sqrt(input_dim)
    bound2 = 1.0 / jnp.sqrt(HIDDEN)
    w1 = jax.random.uniform(k1, (input_dim, HIDDEN), jnp.float32, -bound1, bound1)
    b1 = jax.random.uniform(k2, (HIDDEN,), jnp.float32, -bound1, bound1)
    w2 = jax.random.uniform(k3, (HIDDEN, output_dim), jnp.float32, -bound2, bound2)
    b2 = jax.random.uniform(k4, (output_dim,), jnp.float32, -bound2, bound2)
    return w1, b1, w2, b2


if __name__ == "__main__":
    key = jax.random.PRNGKey(0)
    kx, kx2, kp = jax.random.split(key, 3)

    batch, input_dim, output_dim = 8, 32, 8
    x = jax.random.normal(kx, (batch, input_dim), jnp.float32)
    w1, b1, w2, b2 = init_params(kp, input_dim, output_dim)

    out = dqn_forward(x, w1, b1, w2, b2)
    jax.block_until_ready(out)
    assert out.shape == (batch, output_dim)

    def reference_bf16(xf):
        # Same math as the kernel: bf16 matmul operands, f32 accumulation/bias.
        xb = xf.astype(jnp.bfloat16)
        h = jnp.maximum(jnp.dot(xb, w1.astype(jnp.bfloat16),
                                preferred_element_type=jnp.float32) + b1, 0.0)
        return jnp.dot(h.astype(jnp.bfloat16), w2.astype(jnp.bfloat16),
                       preferred_element_type=jnp.float32) + b2

    ref = reference_bf16(x)
    assert jnp.allclose(out.astype(jnp.float32), ref, atol=2e-2, rtol=2e-2)

    # Sanity check vs. full-f32 reference (loose: bf16 operands + bf16 output).
    ref_f32 = jnp.maximum(x @ w1 + b1, 0.0) @ w2 + b2
    assert jnp.allclose(out.astype(jnp.float32), ref_f32, atol=6e-2, rtol=6e-2)

    # Second shape: multi-tile grid + trailing partial block (no-batch-pad path).
    batch2 = 40
    x2 = jax.random.normal(kx2, (batch2, input_dim), jnp.float32)
    out2 = dqn_forward(x2, w1, b1, w2, b2, tile_b=32)
    jax.block_until_ready(out2)
    assert out2.shape == (batch2, output_dim)
    assert jnp.allclose(out2.astype(jnp.float32), reference_bf16(x2),
                        atol=2e-2, rtol=2e-2)

    print("KERNEL_OK")
</pallas_src>

<mosaic_0001>
module attributes {stable_mosaic.version = 11 : i64} {
  func.func @dqn_kernel(%arg0: i32, %arg1: memref<8x32xf32, #tpu.memory_space<vmem>>, %arg2: memref<32x128xbf16, #tpu.memory_space<vmem>>, %arg3: memref<1x128xf32, #tpu.memory_space<vmem>>, %arg4: memref<128x128xbf16, #tpu.memory_space<vmem>>, %arg5: memref<1x128xf32, #tpu.memory_space<vmem>>, %arg6: memref<8x128xbf16, #tpu.memory_space<vmem>>) attributes {dimension_semantics = [#tpu.dimension_semantics<parallel>], iteration_bounds = array<i64: 1>, scalar_prefetch = 0 : i64, scratch_operands = 0 : i64, tpu.core_type = #tpu.core_type<tc>, window_params = [{transform_indices = @transform_0, window_bounds = array<i64: 8, 32>}, {pipeline_mode = #tpu.pipeline_mode<synchronous>, transform_indices = @transform_1, window_bounds = array<i64: 32, 128>}, {pipeline_mode = #tpu.pipeline_mode<synchronous>, transform_indices = @transform_2, window_bounds = array<i64: 1, 128>}, {pipeline_mode = #tpu.pipeline_mode<synchronous>, transform_indices = @transform_3, window_bounds = array<i64: 128, 128>}, {pipeline_mode = #tpu.pipeline_mode<synchronous>, transform_indices = @transform_4, window_bounds = array<i64: 1, 128>}, {transform_indices = @transform_5, window_bounds = array<i64: 8, 128>}]} {
    %c0 = arith.constant 0 : index
    %c0_0 = arith.constant 0 : index
    %0 = vector.load %arg1[%c0, %c0_0] : memref<8x32xf32, #tpu.memory_space<vmem>>, vector<8x32xf32>
    %1 = arith.truncf %0 : vector<8x32xf32> to vector<8x32xbf16>
    %c0_1 = arith.constant 0 : index
    %c0_2 = arith.constant 0 : index
    %2 = vector.load %arg2[%c0_1, %c0_2] : memref<32x128xbf16, #tpu.memory_space<vmem>>, vector<32x128xbf16>
    %cst = arith.constant dense<0.000000e+00> : vector<8x128xf32>
    %3 = tpu.matmul %1, %2, %cst {dimension_numbers = #tpu.dot_dimension_numbers<[1], [0], [0], [1], [0, 0, 1, 1], [], []>} : vector<8x32xbf16>, vector<32x128xbf16>, vector<8x128xf32> -> vector<8x128xf32>
    %c0_3 = arith.constant 0 : index
    %c0_4 = arith.constant 0 : index
    %4 = vector.load %arg3[%c0_3, %c0_4] : memref<1x128xf32, #tpu.memory_space<vmem>>, vector<1x128xf32>
    %5 = vector.broadcast %4 : vector<1x128xf32> to vector<8x128xf32>
    %6 = arith.addf %3, %5 : vector<8x128xf32>
    %cst_5 = arith.constant 0.000000e+00 : f32
    %7 = vector.broadcast %cst_5 : f32 to vector<8x128xf32>
    %8 = arith.maximumf %6, %7 : vector<8x128xf32>
    %9 = arith.truncf %8 : vector<8x128xf32> to vector<8x128xbf16>
    %c0_6 = arith.constant 0 : index
    %c0_7 = arith.constant 0 : index
    %10 = vector.load %arg4[%c0_6, %c0_7] : memref<128x128xbf16, #tpu.memory_space<vmem>>, vector<128x128xbf16>
    %cst_8 = arith.constant dense<0.000000e+00> : vector<8x128xf32>
    %11 = tpu.matmul %9, %10, %cst_8 {dimension_numbers = #tpu.dot_dimension_numbers<[1], [0], [0], [1], [0, 0, 1, 1], [], []>} : vector<8x128xbf16>, vector<128x128xbf16>, vector<8x128xf32> -> vector<8x128xf32>
    %c0_9 = arith.constant 0 : index
    %c0_10 = arith.constant 0 : index
    %12 = vector.load %arg5[%c0_9, %c0_10] : memref<1x128xf32, #tpu.memory_space<vmem>>, vector<1x128xf32>
    %13 = vector.broadcast %12 : vector<1x128xf32> to vector<8x128xf32>
    %14 = arith.addf %11, %13 : vector<8x128xf32>
    %15 = arith.truncf %14 : vector<8x128xf32> to vector<8x128xbf16>
    %c0_11 = arith.constant 0 : index
    %c0_12 = arith.constant 0 : index
    %16 = vector.load %arg6[%c0_11, %c0_12] : memref<8x128xbf16, #tpu.memory_space<vmem>>, vector<8x128xbf16>
    tpu.vector_store %arg6[%c0_11, %c0_12], %15 {strides = array<i32>} : memref<8x128xbf16, #tpu.memory_space<vmem>>, vector<8x128xbf16>,
    return
  }
  func.func @transform_0(%arg0: i32) -> (i32, i32) {
    %c0_i32 = arith.constant 0 : i32
    %c0_i32_0 = arith.constant 0 : i32
    return %arg0, %c0_i32 : i32, i32
  }
  func.func @transform_1(%arg0: i32) -> (i32, i32) {
    %c0_i32 = arith.constant 0 : i32
    %c0_i32_0 = arith.constant 0 : i32
    %c0_i32_1 = arith.constant 0 : i32
    return %c0_i32, %c0_i32_0 : i32, i32
  }
  func.func @transform_2(%arg0: i32) -> (i32, i32) {
    %c0_i32 = arith.constant 0 : i32
    %c0_i32_0 = arith.constant 0 : i32
    %c0_i32_1 = arith.constant 0 : i32
    return %c0_i32, %c0_i32_0 : i32, i32
  }
  func.func @transform_3(%arg0: i32) -> (i32, i32) {
    %c0_i32 = arith.constant 0 : i32
    %c0_i32_0 = arith.constant 0 : i32
    %c0_i32_1 = arith.constant 0 : i32
    return %c0_i32, %c0_i32_0 : i32, i32
  }
  func.func @transform_4(%arg0: i32) -> (i32, i32) {
    %c0_i32 = arith.constant 0 : i32
    %c0_i32_0 = arith.constant 0 : i32
    %c0_i32_1 = arith.constant 0 : i32
    return %c0_i32, %c0_i32_0 : i32, i32
  }
  func.func @transform_5(%arg0: i32) -> (i32, i32) {
    %c0_i32 = arith.constant 0 : i32
    %c0_i32_0 = arith.constant 0 : i32
    return %arg0, %c0_i32 : i32, i32
  }
}

module attributes {stable_mosaic.version = 11 : i64} {
  func.func @dqn_kernel(%arg0: i32, %arg1: memref<8x32xf32, #tpu.memory_space<vmem>>, %arg2: memref<32x128xbf16, #tpu.memory_space<vmem>>, %arg3: memref<1x128xf32, #tpu.memory_space<vmem>>, %arg4: memref<128x128xbf16, #tpu.memory_space<vmem>>, %arg5: memref<1x128xf32, #tpu.memory_space<vmem>>, %arg6: memref<8x128xbf16, #tpu.memory_space<vmem>>) attributes {dimension_semantics = [#tpu.dimension_semantics<parallel>], iteration_bounds = array<i64: 1>, scalar_prefetch = 0 : i64, scratch_operands = 0 : i64, tpu.core_type = #tpu.core_type<tc>, window_params = [{transform_indices = @transform_0, window_bounds = array<i64: 8, 32>}, {pipeline_mode = #tpu.pipeline_mode<synchronous>, transform_indices = @transform_1, window_bounds = array<i64: 32, 128>}, {pipeline_mode = #tpu.pipeline_mode<synchronous>, transform_indices = @transform_2, window_bounds = array<i64: 1, 128>}, {pipeline_mode = #tpu.pipeline_mode<synchronous>, transform_indices = @transform_3, window_bounds = array<i64: 128, 128>}, {pipeline_mode = #tpu.pipeline_mode<synchronous>, transform_indices = @transform_4, window_bounds = array<i64: 1, 128>}, {transform_indices = @transform_5, window_bounds = array<i64: 8, 128>}]} {
    %c0 = arith.constant 0 : index
    %c0_0 = arith.constant 0 : index
    %0 = vector.load %arg1[%c0, %c0_0] : memref<8x32xf32, #tpu.memory_space<vmem>>, vector<8x32xf32>
    %1 = arith.truncf %0 : vector<8x32xf32> to vector<8x32xbf16>
    %c0_1 = arith.constant 0 : index
    %c0_2 = arith.constant 0 : index
    %2 = vector.load %arg2[%c0_1, %c0_2] : memref<32x128xbf16, #tpu.memory_space<vmem>>, vector<32x128xbf16>
    %cst = arith.constant dense<0.000000e+00> : vector<8x128xf32>
    %3 = tpu.matmul %1, %2, %cst {dimension_numbers = #tpu.dot_dimension_numbers<[1], [0], [0], [1], [0, 0, 1, 1], [], []>} : vector<8x32xbf16>, vector<32x128xbf16>, vector<8x128xf32> -> vector<8x128xf32>
    %c0_3 = arith.constant 0 : index
    %c0_4 = arith.constant 0 : index
    %4 = vector.load %arg3[%c0_3, %c0_4] : memref<1x128xf32, #tpu.memory_space<vmem>>, vector<1x128xf32>
    %5 = vector.broadcast %4 : vector<1x128xf32> to vector<8x128xf32>
    %6 = arith.addf %3, %5 : vector<8x128xf32>
    %cst_5 = arith.constant 0.000000e+00 : f32
    %7 = vector.broadcast %cst_5 : f32 to vector<8x128xf32>
    %8 = arith.maximumf %6, %7 : vector<8x128xf32>
    %9 = arith.truncf %8 : vector<8x128xf32> to vector<8x128xbf16>
    %c0_6 = arith.constant 0 : index
    %c0_7 = arith.constant 0 : index
    %10 = vector.load %arg4[%c0_6, %c0_7] : memref<128x128xbf16, #tpu.memory_space<vmem>>, vector<128x128xbf16>
    %cst_8 = arith.constant dense<0.000000e+00> : vector<8x128xf32>
    %11 = tpu.matmul %9, %10, %cst_8 {dimension_numbers = #tpu.dot_dimension_numbers<[1], [0], [0], [1], [0, 0, 1, 1], [], []>} : vector<8x128xbf16>, vector<128x128xbf16>, vector<8x128xf32> -> vector<8x128xf32>
    %c0_9 = arith.constant 0 : index
    %c0_10 = arith.constant 0 : index
    %12 = vector.load %arg5[%c0_9, %c0_10] : memref<1x128xf32, #tpu.memory_space<vmem>>, vector<1x128xf32>
    %13 = vector.broadcast %12 : vector<1x128xf32> to vector<8x128xf32>
    %14 = arith.addf %11, %13 : vector<8x128xf32>
    %15 = arith.truncf %14 : vector<8x128xf32> to vector<8x128xbf16>
    %c0_11 = arith.constant 0 : index
    %c0_12 = arith.constant 0 : index
    %16 = vector.load %arg6[%c0_11, %c0_12] : memref<8x128xbf16, #tpu.memory_space<vmem>>, vector<8x128xbf16>
    tpu.vector_store %arg6[%c0_11, %c0_12], %15 {strides = array<i32>} : memref<8x128xbf16, #tpu.memory_space<vmem>>, vector<8x128xbf16>,
    return
  }
  func.func @transform_0(%arg0: i32) -> (i32, i32) {
    %c0_i32 = arith.constant 0 : i32
    %c0_i32_0 = arith.constant 0 : i32
    return %arg0, %c0_i32 : i32, i32
  }
  func.func @transform_1(%arg0: i32) -> (i32, i32) {
    %c0_i32 = arith.constant 0 : i32
    %c0_i32_0 = arith.constant 0 : i32
    %c0_i32_1 = arith.constant 0 : i32
    return %c0_i32, %c0_i32_0 : i32, i32
  }
  func.func @transform_2(%arg0: i32) -> (i32, i32) {
    %c0_i32 = arith.constant 0 : i32
    %c0_i32_0 = arith.constant 0 : i32
    %c0_i32_1 = arith.constant 0 : i32
    return %c0_i32, %c0_i32_0 : i32, i32
  }
  func.func @transform_3(%arg0: i32) -> (i32, i32) {
    %c0_i32 = arith.constant 0 : i32
    %c0_i32_0 = arith.constant 0 : i32
    %c0_i32_1 = arith.constant 0 : i32
    return %c0_i32, %c0_i32_0 : i32, i32
  }
  func.func @transform_4(%arg0: i32) -> (i32, i32) {
    %c0_i32 = arith.constant 0 : i32
    %c0_i32_0 = arith.constant 0 : i32
    %c0_i32_1 = arith.constant 0 : i32
    return %c0_i32, %c0_i32_0 : i32, i32
  }
  func.func @transform_5(%arg0: i32) -> (i32, i32) {
    %c0_i32 = arith.constant 0 : i32
    %c0_i32_0 = arith.constant 0 : i32
    return %arg0, %c0_i32 : i32, i32
  }
}

</mosaic_0001>

<llo_original>
// kernel: tpu_custom_call.1
$region0: #{tpu_custom_call.1}
  #allocation0 [shape = 'u32[]', space=smem, size = 0x4, offset = 0x4, fixed_abs, tag = 'smem constant byte address 0x4 - core index']
  #allocation1 [shape = 'u32[144,128]{1,0:T(1,128)}', space=vmem, size = 0x12000, scoped, tag = 'internal scratch']
  %s0 = inlined_call_operand.hbm [shape: f32[8,32], index: 0, kind: input, shape index: {}]
  %s1 = inlined_call_operand.hbm [shape: bf16[32,128], index: 1, kind: input, shape index: {}]
  %s2 = inlined_call_operand.vmem [shape: f32[1,128], index: 2, kind: input, shape index: {}]
  %s3 = inlined_call_operand.hbm [shape: bf16[128,128], index: 3, kind: input, shape index: {}]
  %s4 = inlined_call_operand.vmem [shape: f32[1,128], index: 4, kind: input, shape index: {}]
  %s5 = inlined_call_operand.hbm [shape: bf16[8,128], index: 5, kind: output, shape index: {}]
  %s6 = sld [smem:[#allocation0]]
  $region42: #{tpu_custom_call.1} parent=0
    _
  %s8 = ssub.s32 1, %s6
  %s9 = scalar_select 0, %s8, %s6
  $region1: #{tpu_custom_call.1} parent=0
    #allocation2 [shape = 'u8[4096]{0}', space=vmem, size = 0x1000, scoped, tag = 'input window, operand 0, single buffered']
    #allocation3 [shape = 's32[1]{0}', space=sflag, size = 0x4, scoped, tag = 'scoped memory for tpu_custom_call.1']
    #allocation4 [shape = 's32[1]{0}', space=sflag, size = 0x4, scoped, tag = 'scoped memory for tpu_custom_call.1']
    #allocation5 [shape = 'u8[8192]{0}', space=vmem, size = 0x2000, scoped, tag = 'input window, operand 1, single buffered']
    #allocation6 [shape = 's32[1]{0}', space=sflag, size = 0x4, scoped, tag = 'scoped memory for tpu_custom_call.1']
    #allocation7 [shape = 'u8[32768]{0}', space=vmem, size = 0x8000, scoped, tag = 'input window, operand 3, single buffered']
    #allocation8 [shape = 'u8[2048]{0}', space=vmem, size = 0x800, scoped, tag = 'output window, operand 0, single buffered']
    %10 = vsyncpa [#allocation3], 0
    %11 = vsyncpa [#allocation6], 0
    %12 = vsyncpa [#allocation4], 0
    // Predicated region
    $region2: #{tpu_custom_call.1} parent=1 // pred_check
      _
    $region3: #{tpu_custom_call.1} parent=1 // pred_check_branch
      %14 = sbr.rel (0) target = $region5
    $region4: #{tpu_custom_call.1} parent=1 // pred_region
      %s16 = ssub.s32 128, 128
      %17 = vsyncadd [#allocation3], %s16
      %s19 = sshll.u32 [#allocation2], 4
      %s20 = int_to_ptr.vmem [resolvable:$true] %s19
      %22 = dma.hbm_to_vmem [thread:$0]  %s0, 128, %s20, [#allocation3]
    $region5: #{tpu_custom_call.1} parent=1 // pred_fallthru
      _
    // Predicated region
    $region6: #{tpu_custom_call.1} parent=1 // pred_check
      _
    $region7: #{tpu_custom_call.1} parent=1 // pred_check_branch
      %24 = sbr.rel (0) target = $region9
    $region8: #{tpu_custom_call.1} parent=1 // pred_region
      %s26 = ssub.s32 256, 256
      %27 = vsyncadd [#allocation6], %s26
      %s28 = sshll.u32 [#allocation5], 4
      %s29 = int_to_ptr.vmem [resolvable:$true] %s28
      %34 = dma.hbm_to_vmem [thread:$0]  %s1, 256, %s29, [#allocation6], 64, 64, 4
    $region9: #{tpu_custom_call.1} parent=1 // pred_fallthru
      _
    // Predicated region
    $region10: #{tpu_custom_call.1} parent=1 // pred_check
      _
    $region11: #{tpu_custom_call.1} parent=1 // pred_check_branch
      %36 = sbr.rel (0) target = $region13
    $region12: #{tpu_custom_call.1} parent=1 // pred_region
      _
    $region13: #{tpu_custom_call.1} parent=1 // pred_fallthru
      _
    // Predicated region
    $region14: #{tpu_custom_call.1} parent=1 // pred_check
      _
    $region15: #{tpu_custom_call.1} parent=1 // pred_check_branch
      %38 = sbr.rel (0) target = $region17
    $region16: #{tpu_custom_call.1} parent=1 // pred_region
      %s40 = ssub.s32 1024, 1024
      %41 = vsyncadd [#allocation6], %s40
      %s42 = sshll.u32 [#allocation7], 4
      %s43 = int_to_ptr.vmem [resolvable:$true] %s42
      %48 = dma.hbm_to_vmem [thread:$0]  %s3, 1024, %s43, [#allocation6], 64, 64, 4
    $region17: #{tpu_custom_call.1} parent=1 // pred_fallthru
      _
    // Predicated region
    $region18: #{tpu_custom_call.1} parent=1 // pred_check
      _
    $region19: #{tpu_custom_call.1} parent=1 // pred_check_branch
      %50 = sbr.rel (0) target = $region21
    $region20: #{tpu_custom_call.1} parent=1 // pred_region
      _
    $region21: #{tpu_custom_call.1} parent=1 // pred_fallthru
      _
    // Predicated region
    $region22: #{tpu_custom_call.1} parent=1 // pred_check
      _
    $region23: #{tpu_custom_call.1} parent=1 // pred_check_branch
      %52 = sbr.rel (0) target = $region25
    $region24: #{tpu_custom_call.1} parent=1 // pred_region
      %53 = dma.done [#allocation3], 128
    $region25: #{tpu_custom_call.1} parent=1 // pred_fallthru
      _
    // Predicated region
    $region26: #{tpu_custom_call.1} parent=1 // pred_check
      _
    $region27: #{tpu_custom_call.1} parent=1 // pred_check_branch
      %55 = sbr.rel (0) target = $region29
    $region28: #{tpu_custom_call.1} parent=1 // pred_region
      %56 = dma.done [#allocation6], 256
    $region29: #{tpu_custom_call.1} parent=1 // pred_fallthru
      _
    // Predicated region
    $region30: #{tpu_custom_call.1} parent=1 // pred_check
      _
    $region31: #{tpu_custom_call.1} parent=1 // pred_check_branch
      %58 = sbr.rel (0) target = $region33
    $region32: #{tpu_custom_call.1} parent=1 // pred_region
      %59 = dma.done [#allocation6], 1024
    $region33: #{tpu_custom_call.1} parent=1 // pred_fallthru
      _
    %v61 = vld [vmem:[#allocation2] sm:$0xff]
    %v62 = vpack.c.bf16 %v61, %v61
    %v63 = vld [vmem:[#allocation5] sm:$0xf]
    %v64 = vld [vmem:[#allocation5 + $0x4] sm:$0xf]
    %v65 = vld [vmem:[#allocation5 + $0x8] sm:$0xf]
    %v66 = vld [vmem:[#allocation5 + $0xc] sm:$0xf]
    %v67 = vld [vmem:[%s2] sm:$0x1]
    %v69 = vlaneseq
    %v70 = vshrl.u32 %v69, 7
    %v71 = vsub.s32 0, %v70
    %v72 = vrot.slane %v67, %v71
    %v78 = vunpack.c.l.b16 %v63
    %v79 = vunpack.c.l.b16 %v64
    %v80 = vunpack.c.l.b16 %v65
    %v81 = vunpack.c.l.b16 %v66
    %v82 = vpack.c.b16 %v79, %v78
    %v83 = vpack.c.b16 %v81, %v80
    %vm86 = vcmask 261120
    %v88 = vsel %vm86, %v62, 0
    %90 = vmatprep.subr.bf16.mxu0 0
    %91 = vmatpush1.bf16.msra.mxu0 0
    %92 = vmatprep.subr.bf16.mxu0 0
    %93 = vmatpush1.bf16.msra.mxu0 0
    %94 = vmatprep.subr.bf16.mxu0 0
    %95 = vmatpush1.bf16.msra.mxu0 0
    %96 = vmatprep.subr.bf16.mxu0 0
    %97 = vmatpush1.bf16.msra.mxu0 0
    %98 = vmatprep.subr.bf16.mxu0 0
    %99 = vmatpush1.bf16.msra.mxu0 0
    %100 = vmatprep.subr.bf16.mxu0 0
    %101 = vmatpush1.bf16.msra.mxu0 0
    %102 = vmatprep.subr.bf16.mxu0 0
    %103 = vmatpush1.bf16.msra.mxu0 %v83
    %104 = vmatprep.subr.bf16.mxu0 0
    %105 = vmatpush1.bf16.msra.mxu0 %v82
    %106 = vmatprep.subr.bf16.mxu0 0
    %107 = vmatpush2.bf16.msra.mxu0 0
    %108 = vmatprep.subr.bf16.mxu0 0
    %109 = vmatpush2.bf16.msra.mxu0 0
    %110 = vmatprep.subr.bf16.mxu0 0
    %111 = vmatpush2.bf16.msra.mxu0 0
    %112 = vmatprep.subr.bf16.mxu0 0
    %113 = vmatpush2.bf16.msra.mxu0 0
    %114 = vmatprep.subr.bf16.mxu0 0
    %115 = vmatpush2.bf16.msra.mxu0 0
    %116 = vmatprep.subr.bf16.mxu0 0
    %117 = vmatpush2.bf16.msra.mxu0 0
    %118 = vmatprep.subr.bf16.mxu0 0
    %119 = vmatpush2.bf16.msra.mxu0 0
    %120 = vmatprep.subr.bf16.mxu0 0
    %121 = vmatpush2.bf16.msra.mxu0 0
    %122 = vmatprep.mubr.bf16.mxu0 0
    %123 = vmatmul.mubr.bf16.gmra.mxu0 %v88
    %v124 = vpop.f32.mrf.mxu0
    %v125 = vadd.f32 %v72, %v124
    %v126 = vpop.f32.mrf.mxu0
    %v127 = vpop.f32.mrf.mxu0
    %v128 = vpop.f32.mrf.mxu0
    %129 = vdwg.mxu0
    %v130 = vmax.f32 %v125, 0.0
    %v131 = vpack.c.bf16 %v130, %v130
    %v132 = vld [vmem:[#allocation7] sm:$0xf]
    %v133 = vld [vmem:[#allocation7 + $0x4] sm:$0xf]
    %v134 = vld [vmem:[#allocation7 + $0x8] sm:$0xf]
    %v135 = vld [vmem:[#allocation7 + $0xc] sm:$0xf]
    %v136 = vld [vmem:[#allocation7 + $0x10] sm:$0xf]
    %v137 = vld [vmem:[#allocation7 + $0x14] sm:$0xf]
    %v138 = vld [vmem:[#allocation7 + $0x18] sm:$0xf]
    %v139 = vld [vmem:[#allocation7 + $0x1c] sm:$0xf]
    %v140 = vld [vmem:[#allocation7 + $0x20] sm:$0xf]
    %v141 = vld [vmem:[#allocation7 + $0x24] sm:$0xf]
    %v142 = vld [vmem:[#allocation7 + $0x28] sm:$0xf]
    %v143 = vld [vmem:[#allocation7 + $0x2c] sm:$0xf]
    %v144 = vld [vmem:[#allocation7 + $0x30] sm:$0xf]
    %v145 = vld [vmem:[#allocation7 + $0x34] sm:$0xf]
    %v146 = vld [vmem:[#allocation7 + $0x38] sm:$0xf]
    %v147 = vld [vmem:[#allocation7 + $0x3c] sm:$0xf]
    %v148 = vld [vmem:[%s4] sm:$0x1]
    %v150 = vlaneseq
    %v151 = vshrl.u32 %v150, 7
    %v152 = vsub.s32 0, %v151
    %v153 = vrot.slane %v148, %v152
    %v171 = vunpack.c.l.b16 %v132
    %v172 = vunpack.c.l.b16 %v133
    %v173 = vunpack.c.l.b16 %v134
    %v174 = vunpack.c.l.b16 %v135
    %v175 = vunpack.c.l.b16 %v136
    %v176 = vunpack.c.l.b16 %v137
    %v177 = vunpack.c.l.b16 %v138
    %v178 = vunpack.c.l.b16 %v139
    %v179 = vunpack.c.l.b16 %v140
    %v180 = vunpack.c.l.b16 %v141
    %v181 = vunpack.c.l.b16 %v142
    %v182 = vunpack.c.l.b16 %v143
    %v183 = vunpack.c.l.b16 %v144
    %v184 = vunpack.c.l.b16 %v145
    %v185 = vunpack.c.l.b16 %v146
    %v186 = vunpack.c.l.b16 %v147
    %v187 = vpack.c.b16 %v172, %v171
    %v188 = vpack.c.b16 %v174, %v173
    %v189 = vpack.c.b16 %v176, %v175
    %v190 = vpack.c.b16 %v178, %v177
    %v191 = vpack.c.b16 %v180, %v179
    %v192 = vpack.c.b16 %v182, %v181
    %v193 = vpack.c.b16 %v184, %v183
    %v194 = vpack.c.b16 %v186, %v185
    %203 = vmatprep.subr.bf16.mxu0 0
    %204 = vmatpush1.bf16.msra.mxu0 %v194
    %205 = vmatprep.subr.bf16.mxu0 0
    %206 = vmatpush1.bf16.msra.mxu0 %v193
    %207 = vmatprep.subr.bf16.mxu0 0
    %208 = vmatpush1.bf16.msra.mxu0 %v192
    %209 = vmatprep.subr.bf16.mxu0 0
    %210 = vmatpush1.bf16.msra.mxu0 %v191
    %211 = vmatprep.subr.bf16.mxu0 0
    %212 = vmatpush1.bf16.msra.mxu0 %v190
    %213 = vmatprep.subr.bf16.mxu0 0
    %214 = vmatpush1.bf16.msra.mxu0 %v189
    %215 = vmatprep.subr.bf16.mxu0 0
    %216 = vmatpush1.bf16.msra.mxu0 %v188
    %217 = vmatprep.subr.bf16.mxu0 0
    %218 = vmatpush1.bf16.msra.mxu0 %v187
    %219 = vmatprep.subr.bf16.mxu0 0
    %220 = vmatpush2.bf16.msra.mxu0 0
    %221 = vmatprep.subr.bf16.mxu0 0
    %222 = vmatpush2.bf16.msra.mxu0 0
    %223 = vmatprep.subr.bf16.mxu0 0
    %224 = vmatpush2.bf16.msra.mxu0 0
    %225 = vmatprep.subr.bf16.mxu0 0
    %226 = vmatpush2.bf16.msra.mxu0 0
    %227 = vmatprep.subr.bf16.mxu0 0
    %228 = vmatpush2.bf16.msra.mxu0 0
    %229 = vmatprep.subr.bf16.mxu0 0
    %230 = vmatpush2.bf16.msra.mxu0 0
    %231 = vmatprep.subr.bf16.mxu0 0
    %232 = vmatpush2.bf16.msra.mxu0 0
    %233 = vmatprep.subr.bf16.mxu0 0
    %234 = vmatpush2.bf16.msra.mxu0 0
    %235 = vmatprep.mubr.bf16.mxu0 0
    %236 = vmatmul.mubr.bf16.gmra.mxu0 %v131
    %v237 = vpop.f32.mrf.mxu0
    %v238 = vadd.f32 %v153, %v237
    %v239 = vpop.f32.mrf.mxu0
    %v240 = vpop.f32.mrf.mxu0
    %v241 = vpop.f32.mrf.mxu0
    %242 = vdwg.mxu0
    %v243 = vpack.c.bf16 %v238, %v238
    %244 = vst [vmem:[#allocation8] sm:$0xf] %v243
    // Predicated region
    $region34: #{tpu_custom_call.1} parent=1 // pred_check
      _
    $region35: #{tpu_custom_call.1} parent=1 // pred_check_branch
      %246 = sbr.rel (0) target = $region37
    $region36: #{tpu_custom_call.1} parent=1 // pred_region
      %s248 = ssub.s32 64, 64
      %249 = vsyncadd [#allocation4], %s248
      %s251 = sshll.u32 [#allocation8], 4
      %s252 = int_to_ptr.vmem [resolvable:$true] %s251
      %254 = dma.vmem_to_hbm [thread:$0]  %s252, 64, %s5, [#allocation4]
    $region37: #{tpu_custom_call.1} parent=1 // pred_fallthru
      _
    // Predicated region
    $region38: #{tpu_custom_call.1} parent=1 // pred_check
      _
    $region39: #{tpu_custom_call.1} parent=1 // pred_check_branch
      %256 = sbr.rel (0) target = $region41
    $region40: #{tpu_custom_call.1} parent=1 // pred_region
      %257 = dma.done [#allocation4], 64
    $region41: #{tpu_custom_call.1} parent=1 // pred_fallthru
      _
    %258 = vsyncpa [#allocation3], 1
    %259 = vsyncpa [#allocation6], 1
    %260 = vsyncpa [#allocation4], 1

// kernel: tpu_custom_call.1
$region0: #{tpu_custom_call.1}
  #allocation0 [shape = 'u32[]', space=smem, size = 0x4, offset = 0x4, fixed_abs, tag = 'smem constant byte address 0x4 - core index']
  #allocation1 [shape = 'u32[144,128]{1,0:T(1,128)}', space=vmem, size = 0x12000, scoped, tag = 'internal scratch']
  %s0 = inlined_call_operand.hbm [shape: f32[8,32], index: 0, kind: input, shape index: {}]
  %s1 = inlined_call_operand.hbm [shape: bf16[32,128], index: 1, kind: input, shape index: {}]
  %s2 = inlined_call_operand.vmem [shape: f32[1,128], index: 2, kind: input, shape index: {}]
  %s3 = inlined_call_operand.hbm [shape: bf16[128,128], index: 3, kind: input, shape index: {}]
  %s4 = inlined_call_operand.vmem [shape: f32[1,128], index: 4, kind: input, shape index: {}]
  %s5 = inlined_call_operand.hbm [shape: bf16[8,128], index: 5, kind: output, shape index: {}]
  %s6 = sld [smem:[#allocation0]]
  $region42: #{tpu_custom_call.1} parent=0
    _
  %s8 = ssub.s32 1, %s6
  %s9 = scalar_select 0, %s8, %s6
  $region1: #{tpu_custom_call.1} parent=0
    #allocation2 [shape = 'u8[4096]{0}', space=vmem, size = 0x1000, scoped, tag = 'input window, operand 0, single buffered']
    #allocation3 [shape = 's32[1]{0}', space=sflag, size = 0x4, scoped, tag = 'scoped memory for tpu_custom_call.1']
    #allocation4 [shape = 's32[1]{0}', space=sflag, size = 0x4, scoped, tag = 'scoped memory for tpu_custom_call.1']
    #allocation5 [shape = 'u8[8192]{0}', space=vmem, size = 0x2000, scoped, tag = 'input window, operand 1, single buffered']
    #allocation6 [shape = 's32[1]{0}', space=sflag, size = 0x4, scoped, tag = 'scoped memory for tpu_custom_call.1']
    #allocation7 [shape = 'u8[32768]{0}', space=vmem, size = 0x8000, scoped, tag = 'input window, operand 3, single buffered']
    #allocation8 [shape = 'u8[2048]{0}', space=vmem, size = 0x800, scoped, tag = 'output window, operand 0, single buffered']
    %10 = vsyncpa [#allocation3], 0
    %11 = vsyncpa [#allocation6], 0
    %12 = vsyncpa [#allocation4], 0
    // Predicated region
    $region2: #{tpu_custom_call.1} parent=1 // pred_check
      _
    $region3: #{tpu_custom_call.1} parent=1 // pred_check_branch
      %14 = sbr.rel (0) target = $region5
    $region4: #{tpu_custom_call.1} parent=1 // pred_region
      %s16 = ssub.s32 128, 128
      %17 = vsyncadd [#allocation3], %s16
      %s19 = sshll.u32 [#allocation2], 4
      %s20 = int_to_ptr.vmem [resolvable:$true] %s19
      %22 = dma.hbm_to_vmem [thread:$0]  %s0, 128, %s20, [#allocation3]
    $region5: #{tpu_custom_call.1} parent=1 // pred_fallthru
      _
    // Predicated region
    $region6: #{tpu_custom_call.1} parent=1 // pred_check
      _
    $region7: #{tpu_custom_call.1} parent=1 // pred_check_branch
      %24 = sbr.rel (0) target = $region9
    $region8: #{tpu_custom_call.1} parent=1 // pred_region
      %s26 = ssub.s32 256, 256
      %27 = vsyncadd [#allocation6], %s26
      %s28 = sshll.u32 [#allocation5], 4
      %s29 = int_to_ptr.vmem [resolvable:$true] %s28
      %34 = dma.hbm_to_vmem [thread:$0]  %s1, 256, %s29, [#allocation6], 64, 64, 4
    $region9: #{tpu_custom_call.1} parent=1 // pred_fallthru
      _
    // Predicated region
    $region10: #{tpu_custom_call.1} parent=1 // pred_check
      _
    $region11: #{tpu_custom_call.1} parent=1 // pred_check_branch
      %36 = sbr.rel (0) target = $region13
    $region12: #{tpu_custom_call.1} parent=1 // pred_region
      _
    $region13: #{tpu_custom_call.1} parent=1 // pred_fallthru
      _
    // Predicated region
    $region14: #{tpu_custom_call.1} parent=1 // pred_check
      _
    $region15: #{tpu_custom_call.1} parent=1 // pred_check_branch
      %38 = sbr.rel (0) target = $region17
    $region16: #{tpu_custom_call.1} parent=1 // pred_region
      %s40 = ssub.s32 1024, 1024
      %41 = vsyncadd [#allocation6], %s40
      %s42 = sshll.u32 [#allocation7], 4
      %s43 = int_to_ptr.vmem [resolvable:$true] %s42
      %48 = dma.hbm_to_vmem [thread:$0]  %s3, 1024, %s43, [#allocation6], 64, 64, 4
    $region17: #{tpu_custom_call.1} parent=1 // pred_fallthru
      _
    // Predicated region
    $region18: #{tpu_custom_call.1} parent=1 // pred_check
      _
    $region19: #{tpu_custom_call.1} parent=1 // pred_check_branch
      %50 = sbr.rel (0) target = $region21
    $region20: #{tpu_custom_call.1} parent=1 // pred_region
      _
    $region21: #{tpu_custom_call.1} parent=1 // pred_fallthru
      _
    // Predicated region
    $region22: #{tpu_custom_call.1} parent=1 // pred_check
      _
    $region23: #{tpu_custom_call.1} parent=1 // pred_check_branch
      %52 = sbr.rel (0) target = $region25
    $region24: #{tpu_custom_call.1} parent=1 // pred_region
      %53 = dma.done [#allocation3], 128
    $region25: #{tpu_custom_call.1} parent=1 // pred_fallthru
      _
    // Predicated region
    $region26: #{tpu_custom_call.1} parent=1 // pred_check
      _
    $region27: #{tpu_custom_call.1} parent=1 // pred_check_branch
      %55 = sbr.rel (0) target = $region29
    $region28: #{tpu_custom_call.1} parent=1 // pred_region
      %56 = dma.done [#allocation6], 256
    $region29: #{tpu_custom_call.1} parent=1 // pred_fallthru
      _
    // Predicated region
    $region30: #{tpu_custom_call.1} parent=1 // pred_check
      _
    $region31: #{tpu_custom_call.1} parent=1 // pred_check_branch
      %58 = sbr.rel (0) target = $region33
    $region32: #{tpu_custom_call.1} parent=1 // pred_region
      %59 = dma.done [#allocation6], 1024
    $region33: #{tpu_custom_call.1} parent=1 // pred_fallthru
      _
    %v61 = vld [vmem:[#allocation2] sm:$0xff]
    %v62 = vpack.c.bf16 %v61, %v61
    %v63 = vld [vmem:[#allocation5] sm:$0xf]
    %v64 = vld [vmem:[#allocation5 + $0x4] sm:$0xf]
    %v65 = vld [vmem:[#allocation5 + $0x8] sm:$0xf]
    %v66 = vld [vmem:[#allocation5 + $0xc] sm:$0xf]
    %v67 = vld [vmem:[%s2] sm:$0x1]
    %v69 = vlaneseq
    %v70 = vshrl.u32 %v69, 7
    %v71 = vsub.s32 0, %v70
    %v72 = vrot.slane %v67, %v71
    %v78 = vunpack.c.l.b16 %v63
    %v79 = vunpack.c.l.b16 %v64
    %v80 = vunpack.c.l.b16 %v65
    %v81 = vunpack.c.l.b16 %v66
    %v82 = vpack.c.b16 %v79, %v78
    %v83 = vpack.c.b16 %v81, %v80
    %vm86 = vcmask 261120
    %v88 = vsel %vm86, %v62, 0
    %90 = vmatprep.subr.bf16.mxu0 0
    %91 = vmatpush1.bf16.msra.mxu0 0
    %92 = vmatprep.subr.bf16.mxu0 0
    %93 = vmatpush1.bf16.msra.mxu0 0
    %94 = vmatprep.subr.bf16.mxu0 0
    %95 = vmatpush1.bf16.msra.mxu0 0
    %96 = vmatprep.subr.bf16.mxu0 0
    %97 = vmatpush1.bf16.msra.mxu0 0
    %98 = vmatprep.subr.bf16.mxu0 0
    %99 = vmatpush1.bf16.msra.mxu0 0
    %100 = vmatprep.subr.bf16.mxu0 0
    %101 = vmatpush1.bf16.msra.mxu0 0
    %102 = vmatprep.subr.bf16.mxu0 0
    %103 = vmatpush1.bf16.msra.mxu0 %v83
    %104 = vmatprep.subr.bf16.mxu0 0
    %105 = vmatpush1.bf16.msra.mxu0 %v82
    %106 = vmatprep.subr.bf16.mxu0 0
    %107 = vmatpush2.bf16.msra.mxu0 0
    %108 = vmatprep.subr.bf16.mxu0 0
    %109 = vmatpush2.bf16.msra.mxu0 0
    %110 = vmatprep.subr.bf16.mxu0 0
    %111 = vmatpush2.bf16.msra.mxu0 0
    %112 = vmatprep.subr.bf16.mxu0 0
    %113 = vmatpush2.bf16.msra.mxu0 0
    %114 = vmatprep.subr.bf16.mxu0 0
    %115 = vmatpush2.bf16.msra.mxu0 0
    %116 = vmatprep.subr.bf16.mxu0 0
    %117 = vmatpush2.bf16.msra.mxu0 0
    %118 = vmatprep.subr.bf16.mxu0 0
    %119 = vmatpush2.bf16.msra.mxu0 0
    %120 = vmatprep.subr.bf16.mxu0 0
    %121 = vmatpush2.bf16.msra.mxu0 0
    %122 = vmatprep.mubr.bf16.mxu0 0
    %123 = vmatmul.mubr.bf16.gmra.mxu0 %v88
    %v124 = vpop.f32.mrf.mxu0
    %v125 = vadd.f32 %v72, %v124
    %v126 = vpop.f32.mrf.mxu0
    %v127 = vpop.f32.mrf.mxu0
    %v128 = vpop.f32.mrf.mxu0
    %129 = vdwg.mxu0
    %v130 = vmax.f32 %v125, 0.0
    %v131 = vpack.c.bf16 %v130, %v130
    %v132 = vld [vmem:[#allocation7] sm:$0xf]
    %v133 = vld [vmem:[#allocation7 + $0x4] sm:$0xf]
    %v134 = vld [vmem:[#allocation7 + $0x8] sm:$0xf]
    %v135 = vld [vmem:[#allocation7 + $0xc] sm:$0xf]
    %v136 = vld [vmem:[#allocation7 + $0x10] sm:$0xf]
    %v137 = vld [vmem:[#allocation7 + $0x14] sm:$0xf]
    %v138 = vld [vmem:[#allocation7 + $0x18] sm:$0xf]
    %v139 = vld [vmem:[#allocation7 + $0x1c] sm:$0xf]
    %v140 = vld [vmem:[#allocation7 + $0x20] sm:$0xf]
    %v141 = vld [vmem:[#allocation7 + $0x24] sm:$0xf]
    %v142 = vld [vmem:[#allocation7 + $0x28] sm:$0xf]
    %v143 = vld [vmem:[#allocation7 + $0x2c] sm:$0xf]
    %v144 = vld [vmem:[#allocation7 + $0x30] sm:$0xf]
    %v145 = vld [vmem:[#allocation7 + $0x34] sm:$0xf]
    %v146 = vld [vmem:[#allocation7 + $0x38] sm:$0xf]
    %v147 = vld [vmem:[#allocation7 + $0x3c] sm:$0xf]
    %v148 = vld [vmem:[%s4] sm:$0x1]
    %v150 = vlaneseq
    %v151 = vshrl.u32 %v150, 7
    %v152 = vsub.s32 0, %v151
    %v153 = vrot.slane %v148, %v152
    %v171 = vunpack.c.l.b16 %v132
    %v172 = vunpack.c.l.b16 %v133
    %v173 = vunpack.c.l.b16 %v134
    %v174 = vunpack.c.l.b16 %v135
    %v175 = vunpack.c.l.b16 %v136
    %v176 = vunpack.c.l.b16 %v137
    %v177 = vunpack.c.l.b16 %v138
    %v178 = vunpack.c.l.b16 %v139
    %v179 = vunpack.c.l.b16 %v140
    %v180 = vunpack.c.l.b16 %v141
    %v181 = vunpack.c.l.b16 %v142
    %v182 = vunpack.c.l.b16 %v143
    %v183 = vunpack.c.l.b16 %v144
    %v184 = vunpack.c.l.b16 %v145
    %v185 = vunpack.c.l.b16 %v146
    %v186 = vunpack.c.l.b16 %v147
    %v187 = vpack.c.b16 %v172, %v171
    %v188 = vpack.c.b16 %v174, %v173
    %v189 = vpack.c.b16 %v176, %v175
    %v190 = vpack.c.b16 %v178, %v177
    %v191 = vpack.c.b16 %v180, %v179
    %v192 = vpack.c.b16 %v182, %v181
    %v193 = vpack.c.b16 %v184, %v183
    %v194 = vpack.c.b16 %v186, %v185
    %203 = vmatprep.subr.bf16.mxu0 0
    %204 = vmatpush1.bf16.msra.mxu0 %v194
    %205 = vmatprep.subr.bf16.mxu0 0
    %206 = vmatpush1.bf16.msra.mxu0 %v193
    %207 = vmatprep.subr.bf16.mxu0 0
    %208 = vmatpush1.bf16.msra.mxu0 %v192
    %209 = vmatprep.subr.bf16.mxu0 0
    %210 = vmatpush1.bf16.msra.mxu0 %v191
    %211 = vmatprep.subr.bf16.mxu0 0
    %212 = vmatpush1.bf16.msra.mxu0 %v190
    %213 = vmatprep.subr.bf16.mxu0 0
    %214 = vmatpush1.bf16.msra.mxu0 %v189
    %215 = vmatprep.subr.bf16.mxu0 0
    %216 = vmatpush1.bf16.msra.mxu0 %v188
    %217 = vmatprep.subr.bf16.mxu0 0
    %218 = vmatpush1.bf16.msra.mxu0 %v187
    %219 = vmatprep.subr.bf16.mxu0 0
    %220 = vmatpush2.bf16.msra.mxu0 0
    %221 = vmatprep.subr.bf16.mxu0 0
    %222 = vmatpush2.bf16.msra.mxu0 0
    %223 = vmatprep.subr.bf16.mxu0 0
    %224 = vmatpush2.bf16.msra.mxu0 0
    %225 = vmatprep.subr.bf16.mxu0 0
    %226 = vmatpush2.bf16.msra.mxu0 0
    %227 = vmatprep.subr.bf16.mxu0 0
    %228 = vmatpush2.bf16.msra.mxu0 0
    %229 = vmatprep.subr.bf16.mxu0 0
    %230 = vmatpush2.bf16.msra.mxu0 0
    %231 = vmatprep.subr.bf16.mxu0 0
    %232 = vmatpush2.bf16.msra.mxu0 0
    %233 = vmatprep.subr.bf16.mxu0 0
    %234 = vmatpush2.bf16.msra.mxu0 0
    %235 = vmatprep.mubr.bf16.mxu0 0
    %236 = vmatmul.mubr.bf16.gmra.mxu0 %v131
    %v237 = vpop.f32.mrf.mxu0
    %v238 = vadd.f32 %v153, %v237
    %v239 = vpop.f32.mrf.mxu0
    %v240 = vpop.f32.mrf.mxu0
    %v241 = vpop.f32.mrf.mxu0
    %242 = vdwg.mxu0
    %v243 = vpack.c.bf16 %v238, %v238
    %244 = vst [vmem:[#allocation8] sm:$0xf] %v243
    // Predicated region
    $region34: #{tpu_custom_call.1} parent=1 // pred_check
      _
    $region35: #{tpu_custom_call.1} parent=1 // pred_check_branch
      %246 = sbr.rel (0) target = $region37
    $region36: #{tpu_custom_call.1} parent=1 // pred_region
      %s248 = ssub.s32 64, 64
      %249 = vsyncadd [#allocation4], %s248
      %s251 = sshll.u32 [#allocation8], 4
      %s252 = int_to_ptr.vmem [resolvable:$true] %s251
      %254 = dma.vmem_to_hbm [thread:$0]  %s252, 64, %s5, [#allocation4]
    $region37: #{tpu_custom_call.1} parent=1 // pred_fallthru
      _
    // Predicated region
    $region38: #{tpu_custom_call.1} parent=1 // pred_check
      _
    $region39: #{tpu_custom_call.1} parent=1 // pred_check_branch
      %256 = sbr.rel (0) target = $region41
    $region40: #{tpu_custom_call.1} parent=1 // pred_region
      %257 = dma.done [#allocation4], 64
    $region41: #{tpu_custom_call.1} parent=1 // pred_fallthru
      _
    %258 = vsyncpa [#allocation3], 1
    %259 = vsyncpa [#allocation6], 1
    %260 = vsyncpa [#allocation4], 1

</llo_original>
